<compile_context>
chip_gen: v7x
topology: tpu7x:2x2x1
jax: 0.10.0
libtpu: 0.0.40
codegen_flags: <defaults>
</compile_context>

<pallas_src>
import math

import jax
import jax.numpy as jnp
from jax.experimental import pallas as pl
from jax.experimental.pallas import tpu as pltpu


def _quadratic_act_kernel(a2_ref, x_ref, o_ref):
    # a2_ref: (1,) scalar a**2 in SMEM; x_ref / o_ref: (block_rows, lane) VMEM tiles.
    a2 = a2_ref[0]
    x = x_ref[...]
    # 1 / (1 + (a*x)^2) == 1 / (1 + a^2 * x^2): muls on the VPU, one reciprocal.
    o_ref[...] = 1.0 / (1.0 + x * x * a2)


def quadratic_activation(x, a, *, lane=1024, max_block_rows=1024,
                         vmem_limit_bytes=64 * 1024 * 1024):
    """x: arbitrary-shaped float tensor (e.g. NCHW), a: (1,) learnable scalar."""
    orig_shape = x.shape
    dtype = x.dtype
    total = math.prod(orig_shape)

    # Precompute a^2 once in the wrapper (scalar-on-scalar, essentially free).
    a2 = (a.reshape(-1)[0].astype(dtype) ** 2).reshape(1)

    # Flatten to a lane-dense slab (rows, lane); pad rows so blocks tile evenly.
    rows_needed = pl.cdiv(total, lane)
    block_rows = min(max_block_rows, ((rows_needed + 7) // 8) * 8)  # multiple of 8
    padded_rows = pl.cdiv(rows_needed, block_rows) * block_rows
    padded_total = padded_rows * lane

    flat = x.reshape(-1)
    if padded_total != total:
        flat = jnp.pad(flat, (0, padded_total - total))
    slab = flat.reshape(padded_rows, lane)

    grid = (padded_rows // block_rows,)

    out = pl.pallas_call(
        _quadratic_act_kernel,
        out_shape=jax.ShapeDtypeStruct((padded_rows, lane), dtype),
        grid=grid,
        in_specs=[
            # Scalar parameter a^2 lives in SMEM: no per-step VMEM DMA.
            pl.BlockSpec(memory_space=pltpu.MemorySpace.SMEM),
            # Large lane-dense data tile, default double-buffering.
            pl.BlockSpec((block_rows, lane), lambda i: (i, 0)),
        ],
        out_specs=pl.BlockSpec((block_rows, lane), lambda i: (i, 0)),
        compiler_params=pltpu.CompilerParams(
            dimension_semantics=("parallel",),   # shards across v7x's 2 TCs
            vmem_limit_bytes=vmem_limit_bytes,   # needed on v5e's 16 MiB default
        ),
    )(a2, slab)

    return out.reshape(-1)[:total].reshape(orig_shape)


if __name__ == "__main__":
    key = jax.random.PRNGKey(0)
    # Mirrors nn.Parameter(a * torch.ones(1)) with a = 1.0.
    a_param = jnp.ones((1,), dtype=jnp.float32)

    x = jax.random.normal(key, (2, 4, 16, 16), dtype=jnp.float32)

    out = quadratic_activation(x, a_param)
    out = jax.block_until_ready(out)

    # Reference (plain JAX) check against the PyTorch forward semantics.
    ref = 1.0 / (1.0 + (a_param[0] * x) ** 2)
    assert out.shape == x.shape and out.dtype == x.dtype
    assert jnp.allclose(out, ref, atol=1e-6, rtol=1e-6)

    print("KERNEL_OK")
</pallas_src>

<mosaic_0001>
module attributes {stable_mosaic.version = 11 : i64} {
  func.func @_quadratic_act_kernel(%arg0: i32, %arg1: memref<1xf32, #tpu.memory_space<smem>>, %arg2: memref<8x1024xf32, #tpu.memory_space<vmem>>, %arg3: memref<8x1024xf32, #tpu.memory_space<vmem>>) attributes {dimension_semantics = [#tpu.dimension_semantics<parallel>], iteration_bounds = array<i64: 1>, scalar_prefetch = 0 : i64, scratch_operands = 0 : i64, tpu.core_type = #tpu.core_type<tc>, window_params = [{transform_indices = @transform_0, window_bounds = array<i64: 1>}, {transform_indices = @transform_1, window_bounds = array<i64: 8, 1024>}, {transform_indices = @transform_2, window_bounds = array<i64: 8, 1024>}]} {
    %c0 = arith.constant 0 : index
    %0 = memref.load %arg1[%c0] : memref<1xf32, #tpu.memory_space<smem>>
    %c0_0 = arith.constant 0 : index
    %c0_1 = arith.constant 0 : index
    %1 = vector.load %arg2[%c0_0, %c0_1] : memref<8x1024xf32, #tpu.memory_space<vmem>>, vector<8x1024xf32>
    %2 = arith.mulf %1, %1 : vector<8x1024xf32>
    %3 = vector.broadcast %0 : f32 to vector<8x1024xf32>
    %4 = arith.mulf %2, %3 : vector<8x1024xf32>
    %cst = arith.constant 1.000000e+00 : f32
    %5 = vector.broadcast %cst : f32 to vector<8x1024xf32>
    %6 = arith.addf %5, %4 : vector<8x1024xf32>
    %cst_2 = arith.constant 1.000000e+00 : f32
    %7 = vector.broadcast %cst_2 : f32 to vector<8x1024xf32>
    %8 = arith.divf %7, %6 : vector<8x1024xf32>
    %c0_3 = arith.constant 0 : index
    %c0_4 = arith.constant 0 : index
    %9 = vector.load %arg3[%c0_3, %c0_4] : memref<8x1024xf32, #tpu.memory_space<vmem>>, vector<8x1024xf32>
    tpu.vector_store %arg3[%c0_3, %c0_4], %8 {strides = array<i32>} : memref<8x1024xf32, #tpu.memory_space<vmem>>, vector<8x1024xf32>,
    return
  }
  func.func @transform_0(%arg0: i32) -> i32 {
    %c0_i32 = arith.constant 0 : i32
    %c0_i32_0 = arith.constant 0 : i32
    return %c0_i32 : i32
  }
  func.func @transform_1(%arg0: i32) -> (i32, i32) {
    %c0_i32 = arith.constant 0 : i32
    %c0_i32_0 = arith.constant 0 : i32
    return %arg0, %c0_i32 : i32, i32
  }
  func.func @transform_2(%arg0: i32) -> (i32, i32) {
    %c0_i32 = arith.constant 0 : i32
    %c0_i32_0 = arith.constant 0 : i32
    return %arg0, %c0_i32 : i32, i32
  }
}

</mosaic_0001>

<llo_original>
// kernel: tpu_custom_call.1
$region0: #{tpu_custom_call.1}
  #allocation0 [shape = 'u32[]', space=smem, size = 0x4, offset = 0x4, fixed_abs, tag = 'smem constant byte address 0x4 - core index']
  #allocation1 [shape = 'u32[144,128]{1,0:T(1,128)}', space=vmem, size = 0x12000, scoped, tag = 'internal scratch']
  #allocation2 [shape = 'f32[1]{0:T(128)S(6)}', space=smem, size = 0x200, scoped, tag = 'scoped memory for tpu_custom_call.1']
  %s0 = inlined_call_operand.<no memory space> [shape: f32[1], index: 0, kind: input, shape index: {}]
  %s1 = inlined_call_operand.hbm [shape: f32[8,1024], index: 1, kind: input, shape index: {}]
  %s2 = inlined_call_operand.hbm [shape: f32[8,1024], index: 2, kind: output, shape index: {}]
  %s3 = sld [smem:[#allocation0]]
  $region22: #{tpu_custom_call.1} parent=0
    _
  %s5 = ssub.s32 1, %s3
  %s6 = scalar_select 0, %s5, %s3
  %7 = sst [smem:[#allocation2]] %s0
  $region1: #{tpu_custom_call.1} parent=0
    #allocation3 [shape = 'u8[32768]{0}', space=vmem, size = 0x8000, scoped, tag = 'input window, operand 1, single buffered']
    #allocation4 [shape = 's32[1]{0}', space=sflag, size = 0x4, scoped, tag = 'scoped memory for tpu_custom_call.1']
    #allocation5 [shape = 's32[1]{0}', space=sflag, size = 0x4, scoped, tag = 'scoped memory for tpu_custom_call.1']
    #allocation6 [shape = 'u8[32768]{0}', space=vmem, size = 0x8000, scoped, tag = 'output window, operand 0, single buffered']
    %8 = vsyncpa [#allocation4], 0
    %9 = vsyncpa [#allocation5], 0
    // Predicated region
    $region2: #{tpu_custom_call.1} parent=1 // pred_check
      _
    $region3: #{tpu_custom_call.1} parent=1 // pred_check_branch
      %11 = sbr.rel (0) target = $region5
    $region4: #{tpu_custom_call.1} parent=1 // pred_region
      _
    $region5: #{tpu_custom_call.1} parent=1 // pred_fallthru
      _
    // Predicated region
    $region6: #{tpu_custom_call.1} parent=1 // pred_check
      _
    $region7: #{tpu_custom_call.1} parent=1 // pred_check_branch
      %13 = sbr.rel (0) target = $region9
    $region8: #{tpu_custom_call.1} parent=1 // pred_region
      %s15 = ssub.s32 1024, 1024
      %16 = vsyncadd [#allocation4], %s15
      %s18 = sshll.u32 [#allocation3], 4
      %s19 = int_to_ptr.vmem [resolvable:$true] %s18
      %21 = dma.hbm_to_vmem [thread:$0]  %s1, 1024, %s19, [#allocation4]
    $region9: #{tpu_custom_call.1} parent=1 // pred_fallthru
      _
    // Predicated region
    $region10: #{tpu_custom_call.1} parent=1 // pred_check
      _
    $region11: #{tpu_custom_call.1} parent=1 // pred_check_branch
      %23 = sbr.rel (0) target = $region13
    $region12: #{tpu_custom_call.1} parent=1 // pred_region
      %24 = dma.done [#allocation4], 1024
    $region13: #{tpu_custom_call.1} parent=1 // pred_fallthru
      _
    %s25 = sld [smem:[#allocation2]]
    %v26 = vld [vmem:[#allocation3] sm:$0xff]
    %v27 = vld [vmem:[#allocation3 + $0x8] sm:$0xff]
    %v28 = vld [vmem:[#allocation3 + $0x10] sm:$0xff]
    %v29 = vld [vmem:[#allocation3 + $0x18] sm:$0xff]
    %v30 = vld [vmem:[#allocation3 + $0x20] sm:$0xff]
    %v31 = vld [vmem:[#allocation3 + $0x28] sm:$0xff]
    %v32 = vld [vmem:[#allocation3 + $0x30] sm:$0xff]
    %v33 = vld [vmem:[#allocation3 + $0x38] sm:$0xff]
    %v34 = vmul.f32 %v26, %v26
    %v35 = vmul.f32 %v27, %v27
    %v36 = vmul.f32 %v28, %v28
    %v37 = vmul.f32 %v29, %v29
    %v38 = vmul.f32 %v30, %v30
    %v39 = vmul.f32 %v31, %v31
    %v40 = vmul.f32 %v32, %v32
    %v41 = vmul.f32 %v33, %v33
    %v42 = vstv %s25
    %v43 = vmul.f32 %v34, %v42
    %v44 = vmul.f32 %v35, %v42
    %v45 = vmul.f32 %v36, %v42
    %v46 = vmul.f32 %v37, %v42
    %v47 = vmul.f32 %v38, %v42
    %v48 = vmul.f32 %v39, %v42
    %v49 = vmul.f32 %v40, %v42
    %v50 = vmul.f32 %v41, %v42
    %v51 = vadd.f32 %v43, 1.0
    %v52 = vadd.f32 %v44, 1.0
    %v53 = vadd.f32 %v45, 1.0
    %v54 = vadd.f32 %v46, 1.0
    %v55 = vadd.f32 %v47, 1.0
    %v56 = vadd.f32 %v48, 1.0
    %v57 = vadd.f32 %v49, 1.0
    %v58 = vadd.f32 %v50, 1.0
    %v59 = vrcp.pop %v51
    %v60 = vmul.f32 1.0, %v59
    %v61 = vrcp.pop %v52
    %v62 = vmul.f32 1.0, %v61
    %v63 = vrcp.pop %v53
    %v64 = vmul.f32 1.0, %v63
    %v65 = vrcp.pop %v54
    %v66 = vmul.f32 1.0, %v65
    %v67 = vrcp.pop %v55
    %v68 = vmul.f32 1.0, %v67
    %v69 = vrcp.pop %v56
    %v70 = vmul.f32 1.0, %v69
    %v71 = vrcp.pop %v57
    %v72 = vmul.f32 1.0, %v71
    %v73 = vrcp.pop %v58
    %v74 = vmul.f32 1.0, %v73
    %75 = vst [vmem:[#allocation6] sm:$0xff] %v60
    %76 = vst [vmem:[#allocation6 + $0x8] sm:$0xff] %v62
    %77 = vst [vmem:[#allocation6 + $0x10] sm:$0xff] %v64
    %78 = vst [vmem:[#allocation6 + $0x18] sm:$0xff] %v66
    %79 = vst [vmem:[#allocation6 + $0x20] sm:$0xff] %v68
    %80 = vst [vmem:[#allocation6 + $0x28] sm:$0xff] %v70
    %81 = vst [vmem:[#allocation6 + $0x30] sm:$0xff] %v72
    %82 = vst [vmem:[#allocation6 + $0x38] sm:$0xff] %v74
    // Predicated region
    $region14: #{tpu_custom_call.1} parent=1 // pred_check
      _
    $region15: #{tpu_custom_call.1} parent=1 // pred_check_branch
      %84 = sbr.rel (0) target = $region17
    $region16: #{tpu_custom_call.1} parent=1 // pred_region
      %s86 = ssub.s32 1024, 1024
      %87 = vsyncadd [#allocation5], %s86
      %s89 = sshll.u32 [#allocation6], 4
      %s90 = int_to_ptr.vmem [resolvable:$true] %s89
      %92 = dma.vmem_to_hbm [thread:$0]  %s90, 1024, %s2, [#allocation5]
    $region17: #{tpu_custom_call.1} parent=1 // pred_fallthru
      _
    // Predicated region
    $region18: #{tpu_custom_call.1} parent=1 // pred_check
      _
    $region19: #{tpu_custom_call.1} parent=1 // pred_check_branch
      %94 = sbr.rel (0) target = $region21
    $region20: #{tpu_custom_call.1} parent=1 // pred_region
      %95 = dma.done [#allocation5], 1024
    $region21: #{tpu_custom_call.1} parent=1 // pred_fallthru
      _
    %96 = vsyncpa [#allocation4], 1
    %97 = vsyncpa [#allocation5], 1

</llo_original>
